<compile_context>
chip_gen: v6e
topology: v6e:2x2x1
jax: 0.10.0
libtpu: 0.0.40
codegen_flags: <defaults>
</compile_context>

<pallas_src>
import functools

import jax
import jax.numpy as jnp
from jax.experimental import pallas as pl
from jax.experimental.pallas import tpu as pltpu


def _round_up(x, m):
    return ((x + m - 1) // m) * m


def _focal_loss_kernel(preds_ref, labels_ref, alpha_ref, out_ref, acc_ref, *,
                       gamma, size_average, m_true, tiles_per_core):
    c = pl.program_id(0)          # core / partial-sum index ("parallel")
    i = pl.program_id(1)          # row-tile index within this core ("arbitrary")

    @pl.when(i == 0)
    def _init():
        acc_ref[...] = jnp.zeros_like(acc_ref)

    C, TM = preds_ref.shape

    # Validity mask for the ragged / duplicated tail tile.  Applied to the
    # logits BEFORE exp/lse (garbage lanes could hold NaN/Inf; NaN*0 == NaN
    # would otherwise poison the accumulator) and again on the loss row.
    tile_idx = c * tiles_per_core + i
    row0 = tile_idx * TM
    lane = jax.lax.broadcasted_iota(jnp.int32, (1, TM), 1)
    valid = (row0 + lane) < m_true                                   # (1, TM)

    logits = jnp.where(valid, preds_ref[...].astype(jnp.float32), 0.0)  # (C, TM)
    labels = labels_ref[...].astype(jnp.int32)        # (1, TM); garbage on invalid lanes
    alpha = alpha_ref[...].astype(jnp.float32)        # (C, 1)

    # Numerically stable log-softmax along the class (sublane) axis.
    mx = jnp.max(logits, axis=0, keepdims=True)       # (1, TM)
    z = logits - mx                                   # (C, TM)
    e = jnp.exp(z)                                    # (C, TM)
    sum_e = jnp.sum(e, axis=0, keepdims=True)         # (1, TM)
    lse = jnp.log(sum_e)                              # (1, TM)

    # One-hot gather at the label class (no dynamic gather on TPU).
    class_ids = jax.lax.broadcasted_iota(jnp.int32, (C, TM), 0)
    one_hot = (class_ids == labels).astype(jnp.float32)              # (C, TM)

    z_t = jnp.sum(z * one_hot, axis=0, keepdims=True)                # (1, TM)
    e_t = jnp.sum(e * one_hot, axis=0, keepdims=True)                # = exp(z_t)
    alpha_t = jnp.sum(alpha * one_hot, axis=0, keepdims=True)        # (1, TM)

    logp_t = z_t - lse
    p_t = e_t / sum_e            # reuse exp(z): saves one EUP exp per row
    omp = 1.0 - p_t

    # (1 - p_t) ** gamma: VPU multiplies for small integer gamma, pow otherwise.
    if float(gamma).is_integer() and 0 <= int(gamma) <= 8:
        g = int(gamma)
        focal = jnp.ones_like(omp) if g == 0 else omp
        for _ in range(max(0, g - 1)):
            focal = focal * omp
    else:
        focal = jnp.power(omp, jnp.float32(gamma))

    loss_row = jnp.where(valid, -(alpha_t * focal * logp_t), 0.0)    # (1, TM)
    acc_ref[...] += loss_row     # pure VPU add; cross-lane reduce deferred

    @pl.when(i == pl.num_programs(1) - 1)
    def _finalize():
        denom = jnp.float32(m_true if size_average else 1.0)
        partial = jnp.sum(acc_ref[...]) / denom
        out_ref[...] = jnp.full(out_ref.shape, partial, dtype=out_ref.dtype)


def focal_loss(preds, labels, alpha, gamma=2.0, size_average=True, block_m=None):
    """preds: (..., C) float, labels: (...) int, alpha: (C,) float -> scalar loss."""
    C = preds.shape[-1]
    preds2d = preds.reshape(-1, C)                # keep native dtype (no f32 upcast)
    M = preds2d.shape[0]
    itemsize = jnp.dtype(preds2d.dtype).itemsize

    # Lane-dense layout for small C: classes -> sublanes, rows -> 128-wide lanes.
    # TODO(synk): drop this transpose (one extra HBM read+write of preds) once
    # the producer can emit class-major (C, M) logits directly.
    preds_t = preds2d.T                           # (C, M); NO pad — tail masked in-kernel

    lbl = labels.reshape(1, -1)                   # (1, M); keep narrow int dtypes as-is
    if not (jnp.issubdtype(lbl.dtype, jnp.integer)
            and jnp.dtype(lbl.dtype).itemsize <= 4):
        lbl = lbl.astype(jnp.int32)
    alpha_col = jnp.asarray(alpha, jnp.float32).reshape(C, 1)

    if block_m is None:
        # ~4 MiB preds tile (double-buffered by Pallas), multiple of 128 lanes.
        tm = (4 * 1024 * 1024) // max(1, C * itemsize)
        tm = max(128, min(65536, (tm // 128) * 128))
    else:
        tm = max(128, (block_m // 128) * 128)
    tm = min(tm, _round_up(M, 128))

    num_tiles = pl.cdiv(M, tm)
    # 2-TensorCore split for v7x megacore; a single pass elsewhere / tiny inputs.
    num_cores = 2 if num_tiles > 1 else 1
    tiles_per_core = pl.cdiv(num_tiles, num_cores)
    last_tile = num_tiles - 1
    grid = (num_cores, tiles_per_core)

    # Clamp so a duplicated tail tile (odd tile count on core 1) stays in range;
    # its rows are fully masked in-kernel and contribute exactly zero.
    def col_map(c, i):
        return (0, jnp.minimum(c * tiles_per_core + i, last_tile))

    kernel = functools.partial(
        _focal_loss_kernel, gamma=float(gamma), size_average=bool(size_average),
        m_true=M, tiles_per_core=tiles_per_core)

    lbl_isz = jnp.dtype(lbl.dtype).itemsize
    cost = pl.CostEstimate(
        flops=int(12 * M * C),
        transcendentals=int(M * (C + 2)),
        bytes_accessed=int(M * C * itemsize + M * lbl_isz + C * 4
                           + num_cores * 8 * 128 * 4),
    )

    out = pl.pallas_call(
        kernel,
        out_shape=jax.ShapeDtypeStruct((num_cores * 8, 128), jnp.float32),
        grid_spec=pltpu.PrefetchScalarGridSpec(
            num_scalar_prefetch=0,
            grid=grid,
            in_specs=[
                pl.BlockSpec((C, tm), col_map),              # preds (class-major)
                pl.BlockSpec((1, tm), col_map),              # labels
                pl.BlockSpec((C, 1), lambda c, i: (0, 0)),   # alpha (resident)
            ],
            out_specs=pl.BlockSpec((8, 128), lambda c, i: (c, 0)),  # per-core partial
            scratch_shapes=[pltpu.VMEM((1, tm), jnp.float32)],      # wide accumulator
        ),
        compiler_params=pltpu.CompilerParams(
            dimension_semantics=("parallel", "arbitrary"),
            vmem_limit_bytes=48 * 1024 * 1024,
        ),
        cost_estimate=cost,
    )(preds_t, lbl, alpha_col)

    return jnp.sum(out[::8, 0])        # sum of per-core partial losses


def make_alpha(alpha, num_classes):
    """Mirror FocalLoss.__init__ alpha handling (None / list / scalar)."""
    if alpha is None:
        return jnp.ones((num_classes,), jnp.float32)
    if isinstance(alpha, (list, tuple)):
        assert len(alpha) == num_classes
        return jnp.asarray(alpha, jnp.float32)
    assert alpha < 1
    return jnp.concatenate([jnp.full((1,), alpha, jnp.float32),
                            jnp.full((num_classes - 1,), 1.0 - alpha, jnp.float32)])


def _focal_loss_ref(preds, labels, alpha, gamma=2.0, size_average=True):
    C = preds.shape[-1]
    p = preds.reshape(-1, C).astype(jnp.float32)
    l = labels.reshape(-1).astype(jnp.int32)
    logp = jax.nn.log_softmax(p, axis=1)
    logp_t = jnp.take_along_axis(logp, l[:, None], axis=1)[:, 0]
    p_t = jnp.exp(logp_t)
    alpha_t = jnp.asarray(alpha, jnp.float32)[l]
    loss = -alpha_t * jnp.power(1.0 - p_t, gamma) * logp_t
    return jnp.mean(loss) if size_average else jnp.sum(loss)


if __name__ == "__main__":
    key = jax.random.PRNGKey(0)
    gamma = 2.0
    C = 5
    # Module __init__ with scalar alpha=0.25 -> [0.25, 0.75, 0.75, 0.75, 0.75].
    alpha = make_alpha(0.25, C)

    k1, k2, k3, k4 = jax.random.split(key, 4)

    # --- small detection-style case [B, N, C] ---
    B, N = 2, 8
    preds = jax.random.normal(k1, (B, N, C), dtype=jnp.float32)
    labels = jax.random.randint(k2, (B, N), 0, C, dtype=jnp.int32)

    loss_mean = jax.block_until_ready(
        focal_loss(preds, labels, alpha, gamma=gamma, size_average=True))
    ref_mean = _focal_loss_ref(preds, labels, alpha, gamma=gamma, size_average=True)
    assert jnp.allclose(loss_mean, ref_mean, rtol=1e-5, atol=1e-5), (loss_mean, ref_mean)

    loss_sum = jax.block_until_ready(
        focal_loss(preds, labels, alpha, gamma=gamma, size_average=False))
    ref_sum = _focal_loss_ref(preds, labels, alpha, gamma=gamma, size_average=False)
    assert jnp.allclose(loss_sum, ref_sum, rtol=1e-5, atol=1e-5), (loss_sum, ref_sum)

    # --- multi-tile case exercising the 2-core split, tile-index clamping and
    #     the ragged (masked) last tile: M = 600 rows, tm forced to 256 ---
    B2, N2 = 3, 200
    preds2 = jax.random.normal(k3, (B2, N2, C), dtype=jnp.float32)
    labels2 = jax.random.randint(k4, (B2, N2), 0, C, dtype=jnp.int32)

    loss2 = jax.block_until_ready(
        focal_loss(preds2, labels2, alpha, gamma=gamma, size_average=True, block_m=256))
    ref2 = _focal_loss_ref(preds2, labels2, alpha, gamma=gamma, size_average=True)
    assert jnp.allclose(loss2, ref2, rtol=1e-5, atol=1e-5), (loss2, ref2)

    print("KERNEL_OK")
</pallas_src>

<mosaic_0001>
module attributes {stable_mosaic.version = 11 : i64} {
  func.func @_focal_loss_kernel(%arg0: i32, %arg1: i32, %arg2: memref<5x128xf32, #tpu.memory_space<vmem>>, %arg3: memref<1x128xi32, #tpu.memory_space<vmem>>, %arg4: memref<5x1xf32, #tpu.memory_space<vmem>>, %arg5: memref<8x128xf32, #tpu.memory_space<vmem>>, %arg6: memref<1x128xf32, #tpu.memory_space<vmem>>) attributes {dimension_semantics = [#tpu.dimension_semantics<parallel>, #tpu.dimension_semantics<arbitrary>], iteration_bounds = array<i64: 1, 1>, scalar_prefetch = 0 : i64, scratch_operands = 1 : i64, tpu.core_type = #tpu.core_type<tc>, window_params = [{transform_indices = @transform_0, window_bounds = array<i64: 5, 128>}, {transform_indices = @transform_1, window_bounds = array<i64: 1, 128>}, {pipeline_mode = #tpu.pipeline_mode<synchronous>, transform_indices = @transform_2, window_bounds = array<i64: 5, 1>}, {transform_indices = @transform_3, window_bounds = array<i64: 8, 128>}]} {
    %c0_i32 = arith.constant 0 : i32
    %0 = arith.cmpi eq, %arg1, %c0_i32 : i32
    %1 = arith.extui %0 : i1 to i32
    %c0_i32_0 = arith.constant 0 : i32
    %2 = arith.cmpi ne, %1, %c0_i32_0 : i32
    scf.if %2 {
      %cst_20 = arith.constant 0.000000e+00 : f32
      %58 = vector.broadcast %cst_20 : f32 to vector<1x128xf32>
      %c0_21 = arith.constant 0 : index
      %c0_22 = arith.constant 0 : index
      %59 = vector.load %arg6[%c0_21, %c0_22] : memref<1x128xf32, #tpu.memory_space<vmem>>, vector<1x128xf32>
      tpu.vector_store %arg6[%c0_21, %c0_22], %58 {strides = array<i32>} : memref<1x128xf32, #tpu.memory_space<vmem>>, vector<1x128xf32>,
    } else {
    }
    %c1_i32 = arith.constant 1 : i32
    %3 = arith.muli %arg0, %c1_i32 : i32
    %4 = arith.addi %3, %arg1 : i32
    %c128_i32 = arith.constant 128 : i32
    %5 = arith.muli %4, %c128_i32 : i32
    %6 = tpu.iota {dimensions = array<i32: 1>} : vector<1x128xi32>
    %7 = vector.broadcast %5 : i32 to vector<1x128xi32>
    %8 = arith.addi %7, %6 : vector<1x128xi32>
    %c16_i32 = arith.constant 16 : i32
    %9 = vector.broadcast %c16_i32 : i32 to vector<1x128xi32>
    %10 = arith.cmpi slt, %8, %9 : vector<1x128xi32>
    %c0 = arith.constant 0 : index
    %c0_1 = arith.constant 0 : index
    %11 = vector.load %arg2[%c0, %c0_1] : memref<5x128xf32, #tpu.memory_space<vmem>>, vector<5x128xf32>
    %cst = arith.constant 0.000000e+00 : f32
    %12 = vector.shape_cast %10 : vector<1x128xi1> to vector<1x128xi1>
    %13 = vector.broadcast %12 : vector<1x128xi1> to vector<5x128xi1>
    %14 = vector.broadcast %cst : f32 to vector<5x128xf32>
    %15 = arith.select %13, %11, %14 : vector<5x128xi1>, vector<5x128xf32>
    %c0_2 = arith.constant 0 : index
    %c0_3 = arith.constant 0 : index
    %16 = vector.load %arg3[%c0_2, %c0_3] : memref<1x128xi32, #tpu.memory_space<vmem>>, vector<1x128xi32>
    %c0_4 = arith.constant 0 : index
    %c0_5 = arith.constant 0 : index
    %17 = vector.load %arg4[%c0_4, %c0_5] : memref<5x1xf32, #tpu.memory_space<vmem>>, vector<5x1xf32>
    %cst_6 = arith.constant dense<0xFF800000> : vector<128xf32>
    %18 = vector.multi_reduction <maximumf>, %15, %cst_6 [0] : vector<5x128xf32> to vector<128xf32>
    %19 = vector.shape_cast %18 : vector<128xf32> to vector<1x128xf32>
    %20 = vector.broadcast %19 : vector<1x128xf32> to vector<5x128xf32>
    %21 = arith.subf %15, %20 : vector<5x128xf32>
    %22 = math.exp %21 : vector<5x128xf32>
    %cst_7 = arith.constant dense<0.000000e+00> : vector<128xf32>
    %23 = vector.multi_reduction <add>, %22, %cst_7 [0] : vector<5x128xf32> to vector<128xf32>
    %24 = vector.shape_cast %23 : vector<128xf32> to vector<1x128xf32>
    %25 = math.log %24 : vector<1x128xf32>
    %26 = tpu.iota {dimensions = array<i32: 0>} : vector<5x128xi32>
    %27 = vector.broadcast %16 : vector<1x128xi32> to vector<5x128xi32>
    %28 = arith.cmpi eq, %26, %27 : vector<5x128xi32>
    %29 = arith.extui %28 : vector<5x128xi1> to vector<5x128xi32>
    %30 = arith.sitofp %29 : vector<5x128xi32> to vector<5x128xf32>
    %31 = arith.mulf %21, %30 : vector<5x128xf32>
    %cst_8 = arith.constant dense<0.000000e+00> : vector<128xf32>
    %32 = vector.multi_reduction <add>, %31, %cst_8 [0] : vector<5x128xf32> to vector<128xf32>
    %33 = vector.shape_cast %32 : vector<128xf32> to vector<1x128xf32>
    %34 = arith.mulf %22, %30 : vector<5x128xf32>
    %cst_9 = arith.constant dense<0.000000e+00> : vector<128xf32>
    %35 = vector.multi_reduction <add>, %34, %cst_9 [0] : vector<5x128xf32> to vector<128xf32>
    %36 = vector.shape_cast %35 : vector<128xf32> to vector<1x128xf32>
    %37 = vector.broadcast %17 : vector<5x1xf32> to vector<5x128xf32>
    %38 = arith.mulf %37, %30 : vector<5x128xf32>
    %cst_10 = arith.constant dense<0.000000e+00> : vector<128xf32>
    %39 = vector.multi_reduction <add>, %38, %cst_10 [0] : vector<5x128xf32> to vector<128xf32>
    %40 = vector.shape_cast %39 : vector<128xf32> to vector<1x128xf32>
    %41 = arith.subf %33, %25 : vector<1x128xf32>
    %42 = arith.divf %36, %24 : vector<1x128xf32>
    %cst_11 = arith.constant 1.000000e+00 : f32
    %43 = vector.broadcast %cst_11 : f32 to vector<1x128xf32>
    %44 = arith.subf %43, %42 : vector<1x128xf32>
    %45 = arith.mulf %44, %44 : vector<1x128xf32>
    %46 = arith.mulf %40, %45 : vector<1x128xf32>
    %47 = arith.mulf %46, %41 : vector<1x128xf32>
    %cst_12 = arith.constant 0.000000e+00 : f32
    %48 = vector.broadcast %cst_12 : f32 to vector<1x128xf32>
    %49 = arith.subf %48, %47 : vector<1x128xf32>
    %cst_13 = arith.constant 0.000000e+00 : f32
    %50 = vector.broadcast %cst_13 : f32 to vector<1x128xf32>
    %51 = arith.select %10, %49, %50 : vector<1x128xi1>, vector<1x128xf32>
    %c0_14 = arith.constant 0 : index
    %c0_15 = arith.constant 0 : index
    %52 = vector.load %arg6[%c0_14, %c0_15] : memref<1x128xf32, #tpu.memory_space<vmem>>, vector<1x128xf32>
    %53 = arith.addf %52, %51 : vector<1x128xf32>
    %c0_16 = arith.constant 0 : index
    %c0_17 = arith.constant 0 : index
    %54 = vector.load %arg6[%c0_16, %c0_17] : memref<1x128xf32, #tpu.memory_space<vmem>>, vector<1x128xf32>
    tpu.vector_store %arg6[%c0_16, %c0_17], %53 {strides = array<i32>} : memref<1x128xf32, #tpu.memory_space<vmem>>, vector<1x128xf32>,
    %c0_i32_18 = arith.constant 0 : i32
    %55 = arith.cmpi eq, %arg1, %c0_i32_18 : i32
    %56 = arith.extui %55 : i1 to i32
    %c0_i32_19 = arith.constant 0 : i32
    %57 = arith.cmpi ne, %56, %c0_i32_19 : i32
    scf.if %57 {
      %c0_20 = arith.constant 0 : index
      %c0_21 = arith.constant 0 : index
      %58 = vector.load %arg6[%c0_20, %c0_21] : memref<1x128xf32, #tpu.memory_space<vmem>>, vector<1x128xf32>
      %59 = vector.shape_cast %58 : vector<1x128xf32> to vector<1x1x128xf32>
      %cst_22 = arith.constant dense<0.000000e+00> : vector<1xf32>
      %60 = vector.multi_reduction <add>, %59, %cst_22 [1, 2] : vector<1x1x128xf32> to vector<1xf32>
      %61 = vector.shape_cast %60 : vector<1xf32> to vector<1x1x1xf32>
      %62 = vector.extract %61[0, 0, 0] : f32 from vector<1x1x1xf32>
      %cst_23 = arith.constant 1.600000e+01 : f32
      %63 = arith.divf %62, %cst_23 : f32
      %64 = vector.broadcast %63 : f32 to vector<8x128xf32>
      %c0_24 = arith.constant 0 : index
      %c0_25 = arith.constant 0 : index
      %65 = vector.load %arg5[%c0_24, %c0_25] : memref<8x128xf32, #tpu.memory_space<vmem>>, vector<8x128xf32>
      tpu.vector_store %arg5[%c0_24, %c0_25], %64 {strides = array<i32>} : memref<8x128xf32, #tpu.memory_space<vmem>>, vector<8x128xf32>,
    } else {
    }
    return
  }
  func.func @transform_0(%arg0: i32, %arg1: i32) -> (i32, i32) {
    %c1_i32 = arith.constant 1 : i32
    %0 = arith.muli %arg0, %c1_i32 : i32
    %1 = arith.addi %0, %arg1 : i32
    %c0_i32 = arith.constant 0 : i32
    %2 = arith.minsi %1, %c0_i32 : i32
    %c0_i32_0 = arith.constant 0 : i32
    %c0_i32_1 = arith.constant 0 : i32
    return %c0_i32_0, %2 : i32, i32
  }
  func.func @transform_1(%arg0: i32, %arg1: i32) -> (i32, i32) {
    %c1_i32 = arith.constant 1 : i32
    %0 = arith.muli %arg0, %c1_i32 : i32
    %1 = arith.addi %0, %arg1 : i32
    %c0_i32 = arith.constant 0 : i32
    %2 = arith.minsi %1, %c0_i32 : i32
    %c0_i32_0 = arith.constant 0 : i32
    %c0_i32_1 = arith.constant 0 : i32
    return %c0_i32_0, %2 : i32, i32
  }
  func.func @transform_2(%arg0: i32, %arg1: i32) -> (i32, i32) {
    %c0_i32 = arith.constant 0 : i32
    %c0_i32_0 = arith.constant 0 : i32
    %c0_i32_1 = arith.constant 0 : i32
    return %c0_i32, %c0_i32_0 : i32, i32
  }
  func.func @transform_3(%arg0: i32, %arg1: i32) -> (i32, i32) {
    %c0_i32 = arith.constant 0 : i32
    %c0_i32_0 = arith.constant 0 : i32
    return %arg0, %c0_i32 : i32, i32
  }
}

</mosaic_0001>

<llo_original>
// kernel: tpu_custom_call.1
$region0: #{tpu_custom_call.1}
  #allocation0 [shape = 'u32[]', space=smem, size = 0x4, offset = 0x4, fixed_abs, tag = 'smem constant byte address 0x4 - core index']
  #allocation1 [shape = 'u32[144,128]{1,0:T(1,128)}', space=vmem, size = 0x12000, scoped, tag = 'internal scratch']
  #allocation2 [shape = 'f32[1,128]{1,0:T(1,128)}', space=vmem, size = 0x200, scoped, tag = 'scratch operand']
  %s0 = inlined_call_operand.vmem [shape: f32[5,16], index: 0, kind: input, shape index: {}]
  %s1 = inlined_call_operand.vmem [shape: s32[1,16], index: 1, kind: input, shape index: {}]
  %s2 = inlined_call_operand.vmem [shape: f32[5,1], index: 2, kind: input, shape index: {}]
  %s3 = inlined_call_operand.hbm [shape: f32[8,128], index: 3, kind: output, shape index: {}]
  %s4 = sld [smem:[#allocation0]]
  $region30: #{tpu_custom_call.1} parent=0
    _
  %s6 = ssub.s32 1, %s4
  %s7 = scalar_select 0, %s6, %s4
  $region1: #{tpu_custom_call.1} parent=0
    #allocation3 [shape = 'u8[4096]{0}', space=vmem, size = 0x1000, scoped, tag = 'output window, operand 0, single buffered']
    #allocation4 [shape = 's32[1]{0}', space=sflag, size = 0x4, scoped, tag = 'scoped memory for tpu_custom_call.1']
    %8 = vsyncpa [#allocation4], 0
    // Predicated region
    $region2: #{tpu_custom_call.1} parent=1 // pred_check
      _
    $region3: #{tpu_custom_call.1} parent=1 // pred_check_branch
      %10 = sbr.rel (0) target = $region5
    $region4: #{tpu_custom_call.1} parent=1 // pred_region
      %s11 = sadd.s32 0, 0
      %p12 = scmp.lt.s32.totalorder %s11, 0
      %s13 = scalar_select %p12, %s11, 0
      %p14 = scmp.lt.s32.totalorder %s13, 0
      %s15 = scalar_select %p14, %s13, 0
      %s16 = smul.addr %s15, 8
      %s17 = scalar_lea.vmem %s0, %s16
      %s18 = sadd.s32 0, 0
      %p19 = scmp.lt.s32.totalorder %s18, 0
      %s20 = scalar_select %p19, %s18, 0
    $region5: #{tpu_custom_call.1} parent=1 // pred_fallthru
      _
    // Predicated region
    $region6: #{tpu_custom_call.1} parent=1 // pred_check
      _
    $region7: #{tpu_custom_call.1} parent=1 // pred_check_branch
      %22 = sbr.rel (0) target = $region9
    $region8: #{tpu_custom_call.1} parent=1 // pred_region
      %s23 = sadd.s32 0, 0
      %p24 = scmp.lt.s32.totalorder %s23, 0
      %s25 = scalar_select %p24, %s23, 0
      %p26 = scmp.lt.s32.totalorder %s25, 0
      %s27 = scalar_select %p26, %s25, 0
      %s28 = scalar_lea.vmem %s1, %s27
      %s29 = sadd.s32 0, 0
      %p30 = scmp.lt.s32.totalorder %s29, 0
      %s31 = scalar_select %p30, %s29, 0
    $region9: #{tpu_custom_call.1} parent=1 // pred_fallthru
      _
    // Predicated region
    $region10: #{tpu_custom_call.1} parent=1 // pred_check
      _
    $region11: #{tpu_custom_call.1} parent=1 // pred_check_branch
      %33 = sbr.rel (0) target = $region13
    $region12: #{tpu_custom_call.1} parent=1 // pred_region
      _
    $region13: #{tpu_custom_call.1} parent=1 // pred_fallthru
      _
    %s34 = sadd.s32 0, 0
    %p35 = scmp.lt.s32.totalorder %s34, 0
    %s36 = scalar_select %p35, %s34, 0
    %p37 = scmp.lt.s32.totalorder %s36, 0
    %s38 = scalar_select %p37, %s36, 0
    %s39 = smul.addr %s38, 8
    %s40 = scalar_lea.vmem %s0, %s39
    %s41 = sadd.s32 0, 0
    %p42 = scmp.lt.s32.totalorder %s41, 0
    %s43 = scalar_select %p42, %s41, 0
    %p44 = scmp.lt.s32.totalorder %s43, 0
    %s45 = scalar_select %p44, %s43, 0
    %s46 = scalar_lea.vmem %s1, %s45
    %s47 = sadd.s32 0, 0
    %p48 = scmp.lt.s32.totalorder %s47, 0
    %s49 = scalar_select %p48, %s47, 0
    %p50 = scmp.lt.s32.totalorder %s49, 0
    %s51 = scalar_select %p50, %s49, 0
    %s52 = smul.addr %s51, 8
    %s53 = scalar_lea.vmem %s0, %s52
    %s54 = sadd.s32 0, 0
    %p55 = scmp.lt.s32.totalorder %s54, 0
    %s56 = scalar_select %p55, %s54, 0
    %s57 = sadd.s32 0, 0
    %p58 = scmp.lt.s32.totalorder %s57, 0
    %s59 = scalar_select %p58, %s57, 0
    %p60 = scmp.lt.s32.totalorder %s59, 0
    %s61 = scalar_select %p60, %s59, 0
    %s62 = scalar_lea.vmem %s1, %s61
    %s63 = sadd.s32 0, 0
    %p64 = scmp.lt.s32.totalorder %s63, 0
    %s65 = scalar_select %p64, %s63, 0
    %p66 = scmp.eq.s32.totalorder 0, 0
    // Predicated region
    $region14: #{tpu_custom_call.1} parent=1 // pred_check
      %p67 = pneg %p66
    $region15: #{tpu_custom_call.1} parent=1 // pred_check_branch
      %69 = sbr.rel (%p67) target = $region17
    $region16: #{tpu_custom_call.1} parent=1 // pred_region
      %70 = vst [vmem:[#allocation2] sm:$0x1] 0.0
    $region17: #{tpu_custom_call.1} parent=1 // pred_fallthru
      _
    %s71 = sadd.s32 0, 0
    %s72 = smul.u32 %s71, 128
    %v73 = vlaneseq
    %v74 = vand.u32 %v73, 127
    %v75 = vstv %s72
    %v76 = vadd.s32 %v75, %v74
    %vm77 = vcmp.lt.s32.totalorder %v76, 16
    %v78 = vld [vmem:[%s53] sm:$0x1f]
    %v79 = vsel %vm77, 1, 0
    %vm80 = vcmp.eq.s32.totalorder %v79, 1
    %v81 = vsel %vm80, %v78, 0.0
    %v82 = vld [vmem:[%s62] sm:$0x1]
    %v83 = vld [vmem:[%s2] sm:$0x1f]
    %vm84 = vcmask 1044480
    %v85 = vsel %vm84, %v81, -inf
    %v86 = vrot.slane %v85, 4
    %v87 = vmax.f32 %v85, %v86
    %v88 = vrot.slane %v87, 2
    %v89 = vmax.f32 %v87, %v88
    %v90 = vrot.slane %v89, 1
    %v91 = vmax.f32 %v89, %v90
    %v92 = vsub.f32 %v81, %v91
    %v93 = vmul.f32 %v92, 1.442695
    %v94 = vpow.pop %v93
    %v95 = vsel %vm84, %v94, 0.0
    %v96 = vrot.slane %v95, 4
    %v97 = vadd.f32 %v95, %v96
    %v98 = vrot.slane %v97, 2
    %v99 = vadd.f32 %v97, %v98
    %v100 = vrot.slane %v99, 1
    %v101 = vadd.f32 %v99, %v100
    %v102 = vlog2.pop %v101
    %v103 = vmul.f32 %v102, 0.6931472
    %v104 = vlaneseq
    %v105 = vshrl.u32 %v104, 7
    %v106 = vlaneseq
    %v107 = vshrl.u32 %v106, 7
    %v108 = vsub.s32 0, %v107
    %v109 = vrot.slane %v82, %v108
    %vm110 = vcmp.eq.s32.totalorder %v105, %v109
    %v111 = vsel %vm110, 1, 0
    %v112 = vcvt.s32.f32 %v111
    %v113 = vmul.f32 %v92, %v112
    %v114 = vsel %vm84, %v113, 0.0
    %v115 = vrot.slane %v114, 4
    %v116 = vadd.f32 %v114, %v115
    %v117 = vrot.slane %v116, 2
    %v118 = vadd.f32 %v116, %v117
    %v119 = vrot.slane %v118, 1
    %v120 = vadd.f32 %v118, %v119
    %v121 = vmul.f32 %v94, %v112
    %v122 = vsel %vm84, %v121, 0.0
    %v123 = vrot.slane %v122, 4
    %v124 = vadd.f32 %v122, %v123
    %v125 = vrot.slane %v124, 2
    %v126 = vadd.f32 %v124, %v125
    %v127 = vrot.slane %v126, 1
    %v128 = vadd.f32 %v126, %v127
    %130 = vset.pattern.permute.xlu0 0
    %131 = vperm.xlu0 %130, %v83
    %v132 = vpop.permute.xlu0 %131
    %v134 = vmul.f32 %v132, %v112
    %v135 = vsel %vm84, %v134, 0.0
    %v136 = vrot.slane %v135, 4
    %v137 = vadd.f32 %v135, %v136
    %v138 = vrot.slane %v137, 2
    %v139 = vadd.f32 %v137, %v138
    %v140 = vrot.slane %v139, 1
    %v141 = vadd.f32 %v139, %v140
    %v142 = vsub.f32 %v120, %v103
    %v143 = vrcp.pop %v101
    %v144 = vmul.f32 %v128, %v143
    %v145 = vsub.f32 1.0, %v144
    %v146 = vmul.f32 %v145, %v145
    %v147 = vmul.f32 %v141, %v146
    %v148 = vmul.f32 %v147, %v142
    %v149 = vsub.f32 0.0, %v148
    %v150 = vsel %vm77, %v149, 0.0
    %v151 = vld [vmem:[#allocation2] sm:$0x1]
    %v152 = vadd.f32 %v151, %v150
    %153 = vst [vmem:[#allocation2] sm:$0x1] %v152
    // Predicated region
    $region18: #{tpu_custom_call.1} parent=1 // pred_check
      %p154 = pneg %p66
    $region19: #{tpu_custom_call.1} parent=1 // pred_check_branch
      %156 = sbr.rel (%p154) target = $region21
    $region20: #{tpu_custom_call.1} parent=1 // pred_region
      %v157 = vld [vmem:[#allocation2] sm:$0x1]
      %vm158 = vcmask 1040384
      %v159 = vsel %vm158, %v157, 0.0
      %160 = vadd.xlane.f32.xlu0 %v159
      %v161 = vpop.xlane.xlu0 %160
      %v162 = vrot.slane %v161, 4
      %v163 = vadd.f32 %v161, %v162
      %v164 = vrot.slane %v163, 2
      %v165 = vadd.f32 %v163, %v164
      %v166 = vrot.slane %v165, 1
      %v167 = vadd.f32 %v165, %v166
      %s168 = vtos %v167
      %v169 = vrcp.pop 16.0
      %s170 = vtos %v169
      %s171 = smul.f32 %s168, %s170
      %v172 = vstv %s171
      %173 = vst [vmem:[#allocation3] sm:$0xff] %v172
    $region21: #{tpu_custom_call.1} parent=1 // pred_fallthru
      _
    // Predicated region
    $region22: #{tpu_custom_call.1} parent=1 // pred_check
      _
    $region23: #{tpu_custom_call.1} parent=1 // pred_check_branch
      %175 = sbr.rel (0) target = $region25
    $region24: #{tpu_custom_call.1} parent=1 // pred_region
      %s177 = ssub.s32 128, 128
      %178 = vsyncadd [#allocation4], %s177
      %s180 = sshll.u32 [#allocation3], 4
      %s181 = int_to_ptr.vmem [resolvable:$true] %s180
      %183 = dma.vmem_to_hbm [thread:$0]  %s181, 128, %s3, [#allocation4]
    $region25: #{tpu_custom_call.1} parent=1 // pred_fallthru
      _
    // Predicated region
    $region26: #{tpu_custom_call.1} parent=1 // pred_check
      _
    $region27: #{tpu_custom_call.1} parent=1 // pred_check_branch
      %185 = sbr.rel (0) target = $region29
    $region28: #{tpu_custom_call.1} parent=1 // pred_region
      %186 = dma.done [#allocation4], 128
    $region29: #{tpu_custom_call.1} parent=1 // pred_fallthru
      _
    %187 = vsyncpa [#allocation4], 1

</llo_original>
